<compile_context>
chip_gen: v6e
topology: v6e:2x2x1
jax: 0.10.0
libtpu: 0.0.40
codegen_flags: <defaults>
</compile_context>

<pallas_src>
import functools

import jax
import jax.numpy as jnp
from jax.experimental import pallas as pl
from jax.experimental.pallas import tpu as pltpu


# ---------------------------------------------------------------------------
# Kernels
# ---------------------------------------------------------------------------

def _se_gate_kernel(x_ref, w1_ref, b1_ref, w2_ref, b2_ref, s_ref, acc_ref, *, inv_l):
    """Pass 1: accumulate sum over L tiles; on last L tile compute the SE gate.

    Grid: (n_tiles, l_tiles); l (last axis) is the reduction axis ("arbitrary").
    x_ref:  (TN, C, TL)   current tile of the input
    s_ref:  (TN, C)       output gate (written only on the last L step)
    acc_ref:(TN, C) f32   running sum over L (VMEM scratch)
    """
    li = pl.program_id(1)

    @pl.when(li == 0)
    def _init():
        acc_ref[...] = jnp.zeros_like(acc_ref)

    # Sum over the lane (L) axis of this tile; accumulate in f32.
    acc_ref[...] += jnp.sum(x_ref[...].astype(jnp.float32), axis=-1)

    @pl.when(li == pl.num_programs(1) - 1)
    def _finalize():
        pooled = acc_ref[...] * inv_l                                   # (TN, C)
        h = jnp.dot(pooled, w1_ref[...],
                    preferred_element_type=jnp.float32) + b1_ref[...]   # (TN, Cse)
        h = jnp.maximum(h, 0.0)
        s = jnp.dot(h, w2_ref[...],
                    preferred_element_type=jnp.float32) + b2_ref[...]   # (TN, C)
        s_ref[...] = jax.nn.sigmoid(s)


def _se_scale_kernel(x_ref, s_ref, o_ref):
    """Pass 2: out = x * gate, one fused broadcast-multiply per tile."""
    s = s_ref[...].astype(jnp.float32)                                  # (TN, C)
    o_ref[...] = (x_ref[...].astype(jnp.float32) * s[:, :, None]).astype(o_ref.dtype)


# ---------------------------------------------------------------------------
# Wrapper
# ---------------------------------------------------------------------------

def _pick_l_tile(L, target=512):
    """Largest multiple of 128 that divides L and is <= target; else full L."""
    if L % 128 != 0:
        return L
    best, t = 128, 128
    while t <= min(L, target):
        if L % t == 0:
            best = t
        t += 128
    return best


def _pick_n_tile(N):
    return 8 if (N % 8 == 0 and N > 8) else N


def _vmem_limit_bytes(*buffer_bytes):
    # Double-buffered pipeline buffers + headroom for weights/scratch/semaphores.
    need = 2 * sum(int(b) for b in buffer_bytes) + (2 << 20)
    return int(min(max(need, 8 << 20), 64 << 20))   # stay under v7x's 64 MiB physical VMEM


def selayer_forward(x, w1, b1, w2, b2, *, l_tile=None, n_tile=None):
    """SE layer forward.

    x:  (N, C, L) float32, PyTorch NCW layout.
    w1: (C, Cse)  = conv1.weight[:, :, 0].T     b1: (1, Cse) = conv1.bias
    w2: (Cse, C)  = conv2.weight[:, :, 0].T     b2: (1, C)   = conv2.bias
    Returns (N, C, L), same dtype as x.
    """
    N, C, L = x.shape
    Cse = w1.shape[-1]
    TL = l_tile if l_tile is not None else _pick_l_tile(L)
    TN = n_tile if n_tile is not None else _pick_n_tile(N)
    assert L % TL == 0 and N % TN == 0, (N, L, TN, TL)
    n_tiles, l_tiles = N // TN, L // TL

    itemsize = jnp.dtype(x.dtype).itemsize
    x_tile_bytes = TN * C * TL * itemsize
    gate_bytes = TN * C * 4
    w_bytes = 4 * (w1.size + b1.size + w2.size + b2.size)

    # ---------------- pass 1: per-(N, C) SE gate ----------------
    gate_cost = pl.CostEstimate(
        flops=int(N * C * L + 2 * N * C * Cse * 2),
        transcendentals=int(N * C),
        bytes_accessed=int(N * C * L * itemsize + N * C * 4 + w_bytes))

    gate = pl.pallas_call(
        functools.partial(_se_gate_kernel, inv_l=1.0 / L),
        out_shape=jax.ShapeDtypeStruct((N, C), jnp.float32),
        grid_spec=pltpu.PrefetchScalarGridSpec(
            num_scalar_prefetch=0,
            grid=(n_tiles, l_tiles),
            in_specs=[
                pl.BlockSpec((TN, C, TL), lambda n, l: (n, 0, l)),   # x tile
                pl.BlockSpec((C, Cse), lambda n, l: (0, 0)),         # w1 (resident)
                pl.BlockSpec((1, Cse), lambda n, l: (0, 0)),         # b1
                pl.BlockSpec((Cse, C), lambda n, l: (0, 0)),         # w2
                pl.BlockSpec((1, C), lambda n, l: (0, 0)),           # b2
            ],
            out_specs=pl.BlockSpec((TN, C), lambda n, l: (n, 0)),
            scratch_shapes=[pltpu.VMEM((TN, C), jnp.float32)],
        ),
        compiler_params=pltpu.CompilerParams(
            dimension_semantics=("parallel", "arbitrary"),
            vmem_limit_bytes=_vmem_limit_bytes(x_tile_bytes, gate_bytes, w_bytes)),
        cost_estimate=gate_cost,
    )(x, w1, b1, w2, b2)

    # ---------------- pass 2: out = x * gate ----------------
    scale_cost = pl.CostEstimate(
        flops=int(N * C * L),
        transcendentals=0,
        bytes_accessed=int(2 * N * C * L * itemsize + N * C * 4))

    out = pl.pallas_call(
        _se_scale_kernel,
        out_shape=jax.ShapeDtypeStruct((N, C, L), x.dtype),
        grid_spec=pltpu.PrefetchScalarGridSpec(
            num_scalar_prefetch=0,
            grid=(n_tiles, l_tiles),
            in_specs=[
                pl.BlockSpec((TN, C, TL), lambda n, l: (n, 0, l)),   # x tile
                pl.BlockSpec((TN, C), lambda n, l: (n, 0)),          # gate (resident per n)
            ],
            out_specs=pl.BlockSpec((TN, C, TL), lambda n, l: (n, 0, l)),
        ),
        compiler_params=pltpu.CompilerParams(
            dimension_semantics=("parallel", "parallel"),
            vmem_limit_bytes=_vmem_limit_bytes(x_tile_bytes, x_tile_bytes, gate_bytes)),
        cost_estimate=scale_cost,
    )(x, gate)
    return out


# ---------------------------------------------------------------------------
# Reference + test
# ---------------------------------------------------------------------------

def selayer_reference(x, w1, b1, w2, b2):
    pooled = jnp.mean(x.astype(jnp.float32), axis=-1)          # (N, C)
    h = jnp.maximum(pooled @ w1 + b1, 0.0)                     # (N, Cse)
    s = jax.nn.sigmoid(h @ w2 + b2)                            # (N, C)
    return (x.astype(jnp.float32) * s[:, None, :].transpose(0, 2, 1)).astype(x.dtype)


if __name__ == "__main__":
    # Small config: inplanes=64 (so inplanes//16 = 4), batch 16, length 512.
    N, C, L = 16, 64, 512
    Cse = C // 16

    key = jax.random.PRNGKey(0)
    kx, k1, k2, k3, k4 = jax.random.split(key, 5)
    x = jax.random.normal(kx, (N, C, L), jnp.float32)
    # conv1: torch weight (Cse, C, 1) + bias (Cse,) stored transposed for matmul.
    w1 = 0.1 * jax.random.normal(k1, (C, Cse), jnp.float32)
    b1 = 0.05 * jax.random.normal(k2, (1, Cse), jnp.float32)
    # conv2: torch weight (C, Cse, 1) + bias (C,)
    w2 = 0.1 * jax.random.normal(k3, (Cse, C), jnp.float32)
    b2 = 0.05 * jax.random.normal(k4, (1, C), jnp.float32)

    # Force multi-step grids (n_tiles=2, l_tiles=4) so the pooled-reduction
    # accumulation and the parallel N axis are both exercised.
    out = selayer_forward(x, w1, b1, w2, b2, l_tile=128, n_tile=8)
    out = jax.block_until_ready(out)

    ref = selayer_reference(x, w1, b1, w2, b2)
    assert out.shape == (N, C, L), out.shape
    assert bool(jnp.all(jnp.isfinite(out)))
    assert bool(jnp.allclose(out, ref, rtol=1e-5, atol=1e-5)), \
        float(jnp.max(jnp.abs(out - ref)))
    print("KERNEL_OK")
</pallas_src>

<mosaic_0001>
module attributes {stable_mosaic.version = 11 : i64} {
  func.func @_se_gate_kernel(%arg0: i32, %arg1: i32, %arg2: memref<8x64x128xf32, #tpu.memory_space<vmem>>, %arg3: memref<64x4xf32, #tpu.memory_space<vmem>>, %arg4: memref<1x4xf32, #tpu.memory_space<vmem>>, %arg5: memref<4x64xf32, #tpu.memory_space<vmem>>, %arg6: memref<1x64xf32, #tpu.memory_space<vmem>>, %arg7: memref<8x64xf32, #tpu.memory_space<vmem>>, %arg8: memref<8x64xf32, #tpu.memory_space<vmem>>) attributes {dimension_semantics = [#tpu.dimension_semantics<parallel>, #tpu.dimension_semantics<arbitrary>], iteration_bounds = array<i64: 2, 4>, scalar_prefetch = 0 : i64, scratch_operands = 1 : i64, tpu.core_type = #tpu.core_type<tc>, window_params = [{transform_indices = @transform_0, window_bounds = array<i64: 8, 64, 128>}, {pipeline_mode = #tpu.pipeline_mode<synchronous>, transform_indices = @transform_1, window_bounds = array<i64: 64, 4>}, {pipeline_mode = #tpu.pipeline_mode<synchronous>, transform_indices = @transform_2, window_bounds = array<i64: 1, 4>}, {pipeline_mode = #tpu.pipeline_mode<synchronous>, transform_indices = @transform_3, window_bounds = array<i64: 4, 64>}, {pipeline_mode = #tpu.pipeline_mode<synchronous>, transform_indices = @transform_4, window_bounds = array<i64: 1, 64>}, {transform_indices = @transform_5, window_bounds = array<i64: 8, 64>}]} {
    %c0_i32 = arith.constant 0 : i32
    %0 = arith.cmpi eq, %arg1, %c0_i32 : i32
    %1 = arith.extui %0 : i1 to i32
    %c0_i32_0 = arith.constant 0 : i32
    %2 = arith.cmpi ne, %1, %c0_i32_0 : i32
    scf.if %2 {
      %cst_8 = arith.constant 0.000000e+00 : f32
      %11 = vector.broadcast %cst_8 : f32 to vector<8x64xf32>
      %c0_9 = arith.constant 0 : index
      %c0_10 = arith.constant 0 : index
      %12 = vector.load %arg8[%c0_9, %c0_10] : memref<8x64xf32, #tpu.memory_space<vmem>>, vector<8x64xf32>
      tpu.vector_store %arg8[%c0_9, %c0_10], %11 {strides = array<i32>} : memref<8x64xf32, #tpu.memory_space<vmem>>, vector<8x64xf32>,
    } else {
    }
    %c0 = arith.constant 0 : index
    %c0_1 = arith.constant 0 : index
    %3 = vector.load %arg8[%c0, %c0_1] : memref<8x64xf32, #tpu.memory_space<vmem>>, vector<8x64xf32>
    %c0_2 = arith.constant 0 : index
    %c0_3 = arith.constant 0 : index
    %c0_4 = arith.constant 0 : index
    %4 = vector.load %arg2[%c0_2, %c0_3, %c0_4] : memref<8x64x128xf32, #tpu.memory_space<vmem>>, vector<8x64x128xf32>
    %cst = arith.constant dense<0.000000e+00> : vector<8x64xf32>
    %5 = vector.multi_reduction <add>, %4, %cst [2] : vector<8x64x128xf32> to vector<8x64xf32>
    %6 = arith.addf %3, %5 : vector<8x64xf32>
    %c0_5 = arith.constant 0 : index
    %c0_6 = arith.constant 0 : index
    %7 = vector.load %arg8[%c0_5, %c0_6] : memref<8x64xf32, #tpu.memory_space<vmem>>, vector<8x64xf32>
    tpu.vector_store %arg8[%c0_5, %c0_6], %6 {strides = array<i32>} : memref<8x64xf32, #tpu.memory_space<vmem>>, vector<8x64xf32>,
    %c3_i32 = arith.constant 3 : i32
    %8 = arith.cmpi eq, %arg1, %c3_i32 : i32
    %9 = arith.extui %8 : i1 to i32
    %c0_i32_7 = arith.constant 0 : i32
    %10 = arith.cmpi ne, %9, %c0_i32_7 : i32
    scf.if %10 {
      %c0_8 = arith.constant 0 : index
      %c0_9 = arith.constant 0 : index
      %11 = vector.load %arg8[%c0_8, %c0_9] : memref<8x64xf32, #tpu.memory_space<vmem>>, vector<8x64xf32>
      %cst_10 = arith.constant 0.001953125 : f32
      %12 = vector.broadcast %cst_10 : f32 to vector<8x64xf32>
      %13 = arith.mulf %11, %12 : vector<8x64xf32>
      %c0_11 = arith.constant 0 : index
      %c0_12 = arith.constant 0 : index
      %14 = vector.load %arg3[%c0_11, %c0_12] : memref<64x4xf32, #tpu.memory_space<vmem>>, vector<64x4xf32>
      %cst_13 = arith.constant dense<0.000000e+00> : vector<8x4xf32>
      %15 = tpu.matmul %13, %14, %cst_13 {dimension_numbers = #tpu.dot_dimension_numbers<[1], [0], [0], [1], [0, 0, 1, 1], [], []>} : vector<8x64xf32>, vector<64x4xf32>, vector<8x4xf32> -> vector<8x4xf32>
      %c0_14 = arith.constant 0 : index
      %c0_15 = arith.constant 0 : index
      %16 = vector.load %arg4[%c0_14, %c0_15] : memref<1x4xf32, #tpu.memory_space<vmem>>, vector<1x4xf32>
      %17 = vector.broadcast %16 : vector<1x4xf32> to vector<8x4xf32>
      %18 = arith.addf %15, %17 : vector<8x4xf32>
      %cst_16 = arith.constant 0.000000e+00 : f32
      %19 = vector.broadcast %cst_16 : f32 to vector<8x4xf32>
      %20 = arith.maximumf %18, %19 : vector<8x4xf32>
      %c0_17 = arith.constant 0 : index
      %c0_18 = arith.constant 0 : index
      %21 = vector.load %arg5[%c0_17, %c0_18] : memref<4x64xf32, #tpu.memory_space<vmem>>, vector<4x64xf32>
      %cst_19 = arith.constant dense<0.000000e+00> : vector<8x64xf32>
      %22 = tpu.matmul %20, %21, %cst_19 {dimension_numbers = #tpu.dot_dimension_numbers<[1], [0], [0], [1], [0, 0, 1, 1], [], []>} : vector<8x4xf32>, vector<4x64xf32>, vector<8x64xf32> -> vector<8x64xf32>
      %c0_20 = arith.constant 0 : index
      %c0_21 = arith.constant 0 : index
      %23 = vector.load %arg6[%c0_20, %c0_21] : memref<1x64xf32, #tpu.memory_space<vmem>>, vector<1x64xf32>
      %24 = vector.broadcast %23 : vector<1x64xf32> to vector<8x64xf32>
      %25 = arith.addf %22, %24 : vector<8x64xf32>
      %26 = arith.negf %25 : vector<8x64xf32>
      %27 = math.exp %26 : vector<8x64xf32>
      %cst_22 = arith.constant 1.000000e+00 : f32
      %28 = vector.broadcast %cst_22 : f32 to vector<8x64xf32>
      %29 = arith.addf %28, %27 : vector<8x64xf32>
      %30 = arith.divf %28, %29 : vector<8x64xf32>
      %c0_23 = arith.constant 0 : index
      %c0_24 = arith.constant 0 : index
      %31 = vector.load %arg7[%c0_23, %c0_24] : memref<8x64xf32, #tpu.memory_space<vmem>>, vector<8x64xf32>
      tpu.vector_store %arg7[%c0_23, %c0_24], %30 {strides = array<i32>} : memref<8x64xf32, #tpu.memory_space<vmem>>, vector<8x64xf32>,
    } else {
    }
    return
  }
  func.func @transform_0(%arg0: i32, %arg1: i32) -> (i32, i32, i32) {
    %c0_i32 = arith.constant 0 : i32
    %c0_i32_0 = arith.constant 0 : i32
    return %arg0, %c0_i32, %arg1 : i32, i32, i32
  }
  func.func @transform_1(%arg0: i32, %arg1: i32) -> (i32, i32) {
    %c0_i32 = arith.constant 0 : i32
    %c0_i32_0 = arith.constant 0 : i32
    %c0_i32_1 = arith.constant 0 : i32
    return %c0_i32, %c0_i32_0 : i32, i32
  }
  func.func @transform_2(%arg0: i32, %arg1: i32) -> (i32, i32) {
    %c0_i32 = arith.constant 0 : i32
    %c0_i32_0 = arith.constant 0 : i32
    %c0_i32_1 = arith.constant 0 : i32
    return %c0_i32, %c0_i32_0 : i32, i32
  }
  func.func @transform_3(%arg0: i32, %arg1: i32) -> (i32, i32) {
    %c0_i32 = arith.constant 0 : i32
    %c0_i32_0 = arith.constant 0 : i32
    %c0_i32_1 = arith.constant 0 : i32
    return %c0_i32, %c0_i32_0 : i32, i32
  }
  func.func @transform_4(%arg0: i32, %arg1: i32) -> (i32, i32) {
    %c0_i32 = arith.constant 0 : i32
    %c0_i32_0 = arith.constant 0 : i32
    %c0_i32_1 = arith.constant 0 : i32
    return %c0_i32, %c0_i32_0 : i32, i32
  }
  func.func @transform_5(%arg0: i32, %arg1: i32) -> (i32, i32) {
    %c0_i32 = arith.constant 0 : i32
    %c0_i32_0 = arith.constant 0 : i32
    return %arg0, %c0_i32 : i32, i32
  }
}

</mosaic_0001>

<llo_original>
// kernel: tpu_custom_call.1
$region0: #{tpu_custom_call.1}
  #allocation0 [shape = 'u32[]', space=smem, size = 0x4, offset = 0x4, fixed_abs, tag = 'smem constant byte address 0x4 - core index']
  #allocation1 [shape = 'u32[144,128]{1,0:T(1,128)}', space=vmem, size = 0x12000, scoped, tag = 'internal scratch']
  #allocation2 [shape = 'f32[8,64]{1,0:T(8,128)}', space=vmem, size = 0x1000, scoped, tag = 'scratch operand']
  %s0 = inlined_call_operand.hbm [shape: f32[16,64,512], index: 0, kind: input, shape index: {}]
  %s1 = inlined_call_operand.vmem [shape: f32[64,4], index: 1, kind: input, shape index: {}]
  %s2 = inlined_call_operand.hbm [shape: f32[1,4], index: 2, kind: input, shape index: {}]
  %s3 = inlined_call_operand.hbm [shape: f32[4,64], index: 3, kind: input, shape index: {}]
  %s4 = inlined_call_operand.hbm [shape: f32[1,64], index: 4, kind: input, shape index: {}]
  %s5 = inlined_call_operand.hbm [shape: f32[16,64], index: 5, kind: output, shape index: {}]
  %s6 = sld [smem:[#allocation0]]
  $region77: #{tpu_custom_call.1} parent=0
    _
  %s8 = ssub.s32 1, %s6
  %s9 = scalar_select 0, %s8, %s6
  $region1: #{tpu_custom_call.1} parent=0
    #allocation3 [shape = 'u8[524288]{0}', space=vmem, size = 0x80000, scoped, tag = 'input window, operand 0']
    #allocation4 [shape = 's32[2]{0}', space=sflag, size = 0x8, scoped, tag = 'scoped memory for tpu_custom_call.1']
    #allocation5 [shape = 's32[2]{0}', space=sflag, size = 0x8, scoped, tag = 'scoped memory for tpu_custom_call.1']
    #allocation6 [shape = 'u8[512]{0}', space=vmem, size = 0x400, scoped, tag = 'input window, operand 2, single buffered']
    #allocation7 [shape = 's32[1]{0}', space=sflag, size = 0x4, scoped, tag = 'scoped memory for tpu_custom_call.1']
    #allocation8 [shape = 'u8[2048]{0}', space=vmem, size = 0x800, scoped, tag = 'input window, operand 3, single buffered']
    #allocation9 [shape = 'u8[512]{0}', space=vmem, size = 0x400, scoped, tag = 'input window, operand 4, single buffered']
    #allocation10 [shape = 's32[1]{0}', space=sflag, size = 0x4, scoped, tag = 'scoped memory for tpu_custom_call.1']
    #allocation11 [shape = 'u8[8192]{0}', space=vmem, size = 0x2000, scoped, tag = 'output window, operand 0']
    %10 = vsyncpa [#allocation4], 0
    %s11 = scalar_lea.sflag [#allocation4], 1
    %12 = vsyncpa %s11, 0
    %13 = vsyncpa [#allocation7], 0
    %14 = vsyncpa [#allocation10], 0
    %15 = vsyncpa [#allocation5], 0
    %s16 = scalar_lea.sflag [#allocation5], 1
    %17 = vsyncpa %s16, 0
    loop: start=0, step=1, limit=10
    $region2: #{tpu_custom_call.1} parent=1 // loop_pre_header
      _
    $region3: #{tpu_custom_call.1} parent=1 // loop_header
      %s19 = sphi 0, %s23
      %p20 = scmp.ge.s32.totalorder %s19, 10
      %s26 = sphi 0, %s38
      %s27 = sphi 0, %s34
      %s28 = sphi 0, %s26
      %s29 = sphi 0, %s27
      %s30 = sphi 0, %s28
      %s31 = sphi 0, %s29
      %s43 = sphi 0, %s45
      %s46 = sphi 0, %s43
      %s47 = sphi 0, %s46
      %s63 = sphi 0, %s47
      %s67 = sphi 0, %s67
      %s69 = sphi 0, %s67
      %s70 = sphi 0, %s69
      %s84 = sphi 0, %s70
      %s88 = sphi 0, %s88
      %s90 = sphi 0, %s88
      %s91 = sphi 0, %s90
      %s105 = sphi 0, %s91
      %s109 = sphi 0, %s109
      %s111 = sphi 0, %s109
      %s112 = sphi 0, %s111
      %s126 = sphi 0, %s112
      %s130 = sphi 0, %s130
      %s132 = sphi 0, %s130
      %s133 = sphi 0, %s132
      %s147 = sphi 0, %s133
      %s153 = sphi 0, %s155
      %s156 = sphi 0, %s153
      %s157 = sphi 0, %s156
      %s173 = sphi 0, %s157
    $region4: #{tpu_custom_call.1} parent=1 // loop_header_branch
      %22 = sbr.rel (%p20) target = $region8
    $region5: #{tpu_custom_call.1} parent=1 // loop_body
      %s24 = ssub.s32 %s19, 1
      %s25 = ssub.s32 %s19, 2
      %s32 = sadd.s32 1, %s27
      %p33 = scmp.ge.s32.totalorder %s32, 4
      %s34 = scalar_select %p33, 0, %s32
      %s35 = sadd.s32 1, %s26
      %s36 = scalar_select %p33, %s35, %s26
      %p37 = scmp.ge.s32.totalorder %s36, 2
      %s38 = scalar_select %p37, 0, %s36
      %s39 = ssub.s32 %s26, %s38
      %s40 = ssub.s32 %s27, %s34
      %s41 = sor.u32 %s39, %s40
      %p42 = scmp.eq.s32.totalorder %s41, 0
      %s44 = sadd.s32 %s43, 1
      %s45 = scalar_select %p42, %s43, %s44
      %p48 = pneg %p42
      %p49 = scmp.eq.s32.totalorder %s19, 7
      %p50 = por %p48, %p49
      %p51 = scmp.ne.s32.totalorder %s43, %s46
      %p52 = scmp.eq.s32.totalorder %s19, 0
      %p53 = por %p51, %p52
      %p54 = scmp.ne.s32.totalorder %s43, %s46
      %p55 = scmp.eq.s32.totalorder %s24, 7
      %p56 = por %p54, %p55
      %p57 = scmp.ne.s32.totalorder %s46, %s47
      %p58 = scmp.eq.s32.totalorder %s24, 0
      %p59 = por %p57, %p58
      %p60 = scmp.ne.s32.totalorder %s46, %s47
      %p61 = scmp.eq.s32.totalorder %s25, 7
      %p62 = por %p60, %p61
      %p64 = scmp.ne.s32.totalorder %s47, %s63
      %p65 = scmp.eq.s32.totalorder %s25, 0
      %p66 = por %p64, %p65
      %s68 = sadd.s32 %s67, 1
      %p71 = scmp.eq.s32.totalorder %s19, 7
      %p72 = scmp.ne.s32.totalorder %s67, %s69
      %p73 = scmp.eq.s32.totalorder %s19, 0
      %p74 = por %p72, %p73
      %p75 = scmp.ne.s32.totalorder %s67, %s69
      %p76 = scmp.eq.s32.totalorder %s24, 7
      %p77 = por %p75, %p76
      %p78 = scmp.ne.s32.totalorder %s69, %s70
      %p79 = scmp.eq.s32.totalorder %s24, 0
      %p80 = por %p78, %p79
      %p81 = scmp.ne.s32.totalorder %s69, %s70
      %p82 = scmp.eq.s32.totalorder %s25, 7
      %p83 = por %p81, %p82
      %p85 = scmp.ne.s32.totalorder %s70, %s84
      %p86 = scmp.eq.s32.totalorder %s25, 0
      %p87 = por %p85, %p86
      %s89 = sadd.s32 %s88, 1
      %p92 = scmp.eq.s32.totalorder %s19, 7
      %p93 = scmp.ne.s32.totalorder %s88, %s90
      %p94 = scmp.eq.s32.totalorder %s19, 0
      %p95 = por %p93, %p94
      %p96 = scmp.ne.s32.totalorder %s88, %s90
      %p97 = scmp.eq.s32.totalorder %s24, 7
      %p98 = por %p96, %p97
      %p99 = scmp.ne.s32.totalorder %s90, %s91
      %p100 = scmp.eq.s32.totalorder %s24, 0
      %p101 = por %p99, %p100
      %p102 = scmp.ne.s32.totalorder %s90, %s91
      %p103 = scmp.eq.s32.totalorder %s25, 7
      %p104 = por %p102, %p103
      %p106 = scmp.ne.s32.totalorder %s91, %s105
      %p107 = scmp.eq.s32.totalorder %s25, 0
      %p108 = por %p106, %p107
      %s110 = sadd.s32 %s109, 1
      %p113 = scmp.eq.s32.totalorder %s19, 7
      %p114 = scmp.ne.s32.totalorder %s109, %s111
      %p115 = scmp.eq.s32.totalorder %s19, 0
      %p116 = por %p114, %p115
      %p117 = scmp.ne.s32.totalorder %s109, %s111
      %p118 = scmp.eq.s32.totalorder %s24, 7
      %p119 = por %p117, %p118
      %p120 = scmp.ne.s32.totalorder %s111, %s112
      %p121 = scmp.eq.s32.totalorder %s24, 0
      %p122 = por %p120, %p121
      %p123 = scmp.ne.s32.totalorder %s111, %s112
      %p124 = scmp.eq.s32.totalorder %s25, 7
      %p125 = por %p123, %p124
      %p127 = scmp.ne.s32.totalorder %s112, %s126
      %p128 = scmp.eq.s32.totalorder %s25, 0
      %p129 = por %p127, %p128
      %s131 = sadd.s32 %s130, 1
      %p134 = scmp.eq.s32.totalorder %s19, 7
      %p135 = scmp.ne.s32.totalorder %s130, %s132
      %p136 = scmp.eq.s32.totalorder %s19, 0
      %p137 = por %p135, %p136
      %p138 = scmp.ne.s32.totalorder %s130, %s132
      %p139 = scmp.eq.s32.totalorder %s24, 7
      %p140 = por %p138, %p139
      %p141 = scmp.ne.s32.totalorder %s132, %s133
      %p142 = scmp.eq.s32.totalorder %s24, 0
      %p143 = por %p141, %p142
      %p144 = scmp.ne.s32.totalorder %s132, %s133
      %p145 = scmp.eq.s32.totalorder %s25, 7
      %p146 = por %p144, %p145
      %p148 = scmp.ne.s32.totalorder %s133, %s147
      %p149 = scmp.eq.s32.totalorder %s25, 0
      %p150 = por %p148, %p149
      %s151 = ssub.s32 %s26, %s38
      %p152 = scmp.eq.s32.totalorder %s151, 0
      %s154 = sadd.s32 %s153, 1
      %s155 = scalar_select %p152, %s153, %s154
      %p158 = pneg %p152
      %p159 = scmp.eq.s32.totalorder %s19, 7
      %p160 = por %p158, %p159
      %p161 = scmp.ne.s32.totalorder %s153, %s156
      %p162 = scmp.eq.s32.totalorder %s19, 0
      %p163 = por %p161, %p162
      %p164 = scmp.ne.s32.totalorder %s153, %s156
      %p165 = scmp.eq.s32.totalorder %s24, 7
      %p166 = por %p164, %p165
      %p167 = scmp.ne.s32.totalorder %s156, %s157
      %p168 = scmp.eq.s32.totalorder %s24, 0
      %p169 = por %p167, %p168
      %p170 = scmp.ne.s32.totalorder %s156, %s157
      %p171 = scmp.eq.s32.totalorder %s25, 7
      %p172 = por %p170, %p171
      %p174 = scmp.ne.s32.totalorder %s157, %s173
      %p175 = scmp.eq.s32.totalorder %s25, 0
      %p176 = por %p174, %p175
      %p177 = scmp.le.s32.totalorder 1, %s19
      %p178 = scmp.lt.s32.totalorder %s19, 9
      %p179 = pnand %p177, %p178
      %p180 = pneg %p179
      // Predicated region
      $region9: #{tpu_custom_call.1} parent=5 // pred_check
        _
      $region10: #{tpu_custom_call.1} parent=5 // pred_check_branch
        %182 = sbr.rel (%p179) target = $region12
      $region11: #{tpu_custom_call.1} parent=5 // pred_region
        %s183 = ssub.s32 %s19, 1
        // Predicated region
        $region13: #{tpu_custom_call.1} parent=11 // pred_check
          %p184 = pneg %p80
        $region14: #{tpu_custom_call.1} parent=11 // pred_check_branch
          %186 = sbr.rel (%p184) target = $region16
        $region15: #{tpu_custom_call.1} parent=11 // pred_region
          _
        $region16: #{tpu_custom_call.1} parent=11 // pred_fallthru
          _
        // Predicated region
        $region17: #{tpu_custom_call.1} parent=11 // pred_check
          %p187 = pneg %p101
        $region18: #{tpu_custom_call.1} parent=11 // pred_check_branch
          %189 = sbr.rel (%p187) target = $region20
        $region19: #{tpu_custom_call.1} parent=11 // pred_region
          %s191 = ssub.s32 16, 16
          %192 = vsyncadd [#allocation7], %s191
          %s194 = sshll.u32 [#allocation6], 4
          %s195 = int_to_ptr.vmem [resolvable:$true] %s194
          %197 = dma.hbm_to_vmem [thread:$0]  %s2, 16, %s195, [#allocation7]
        $region20: #{tpu_custom_call.1} parent=11 // pred_fallthru
          _
        // Predicated region
        $region21: #{tpu_custom_call.1} parent=11 // pred_check
          %p198 = pneg %p122
        $region22: #{tpu_custom_call.1} parent=11 // pred_check_branch
          %200 = sbr.rel (%p198) target = $region24
        $region23: #{tpu_custom_call.1} parent=11 // pred_region
          %s202 = ssub.s32 64, 64
          %203 = vsyncadd [#allocation7], %s202
          %s205 = sshll.u32 [#allocation8], 4
          %s206 = int_to_ptr.vmem [resolvable:$true] %s205
          %208 = dma.hbm_to_vmem [thread:$0]  %s3, 64, %s206, [#allocation7]
        $region24: #{tpu_custom_call.1} parent=11 // pred_fallthru
          _
        // Predicated region
        $region25: #{tpu_custom_call.1} parent=11 // pred_check
          %p209 = pneg %p143
        $region26: #{tpu_custom_call.1} parent=11 // pred_check_branch
          %211 = sbr.rel (%p209) target = $region28
        $region27: #{tpu_custom_call.1} parent=11 // pred_region
          %s213 = ssub.s32 16, 16
          %214 = vsyncadd [#allocation10], %s213
          %s216 = sshll.u32 [#allocation9], 4
          %s217 = int_to_ptr.vmem [resolvable:$true] %s216
          %219 = dma.hbm_to_vmem [thread:$0]  %s4, 16, %s217, [#allocation10]
        $region28: #{tpu_custom_call.1} parent=11 // pred_fallthru
          _
      $region12: #{tpu_custom_call.1} parent=5 // pred_fallthru
        _
      %p220 = scmp.lt.s32.totalorder %s19, 8
      // Predicated region
      $region29: #{tpu_custom_call.1} parent=5 // pred_check
        %p221 = pneg %p220
      $region30: #{tpu_custom_call.1} parent=5 // pred_check_branch
        %223 = sbr.rel (%p221) target = $region32
      $region31: #{tpu_custom_call.1} parent=5 // pred_region
        // Predicated region
        $region33: #{tpu_custom_call.1} parent=31 // pred_check
          %p224 = pneg %p53
        $region34: #{tpu_custom_call.1} parent=31 // pred_check_branch
          %226 = sbr.rel (%p224) target = $region36
        $region35: #{tpu_custom_call.1} parent=31 // pred_region
          %s227 = sand.u32 %s43, 1
          %s228 = scalar_lea.sflag [#allocation4], %s227
          %s229 = sand.u32 %s43, 1
          %s230 = smul.addr %s229, 512
          %s231 = scalar_lea.vmem [#allocation3], %s230
          %s232 = smul.u32 8, %s26
          %s234 = ssub.s32 8192, 8192
          %235 = vsyncadd %s228, %s234
          %s236 = smul.addr %s232, 32
          %s237 = sadd.s32 %s27, %s236
          %s238 = smul.addr %s237, 128
          %s239 = scalar_lea.hbm %s0, %s238
          %s240 = sshll.u32 %s231, 4
          %s241 = int_to_ptr.vmem [resolvable:$true] %s240
          %246 = dma.hbm_to_vmem [thread:$0]  %s239, 8192, %s241, %s228, 512, 128, 8
        $region36: #{tpu_custom_call.1} parent=31 // pred_fallthru
          _
      $region32: #{tpu_custom_call.1} parent=5 // pred_fallthru
        _
      %p247 = scmp.le.s32.totalorder 1, %s19
      %p248 = scmp.lt.s32.totalorder %s19, 9
      %p249 = pnand %p247, %p248
      %p250 = pneg %p249
      // Predicated region
      $region37: #{tpu_custom_call.1} parent=5 // pred_check
        _
      $region38: #{tpu_custom_call.1} parent=5 // pred_check_branch
        %252 = sbr.rel (%p249) target = $region40
      $region39: #{tpu_custom_call.1} parent=5 // pred_region
        %s253 = ssub.s32 %s19, 1
        %s254 = sand.u32 %s46, 1
        %s255 = scalar_lea.sflag [#allocation4], %s254
        %s256 = sand.u32 %s46, 1
        %s257 = smul.addr %s256, 512
        %s258 = scalar_lea.vmem [#allocation3], %s257
        // Predicated region
        $region41: #{tpu_custom_call.1} parent=39 // pred_check
          %p259 = pneg %p59
        $region42: #{tpu_custom_call.1} parent=39 // pred_check_branch
          %261 = sbr.rel (%p259) target = $region44
        $region43: #{tpu_custom_call.1} parent=39 // pred_region
          %262 = dma.done %s255, 8192
        $region44: #{tpu_custom_call.1} parent=39 // pred_fallthru
          _
        // Predicated region
        $region45: #{tpu_custom_call.1} parent=39 // pred_check
          %p263 = pneg %p101
        $region46: #{tpu_custom_call.1} parent=39 // pred_check_branch
          %265 = sbr.rel (%p263) target = $region48
        $region47: #{tpu_custom_call.1} parent=39 // pred_region
          %266 = dma.done [#allocation7], 16
        $region48: #{tpu_custom_call.1} parent=39 // pred_fallthru
          _
        // Predicated region
        $region49: #{tpu_custom_call.1} parent=39 // pred_check
          %p267 = pneg %p122
        $region50: #{tpu_custom_call.1} parent=39 // pred_check_branch
          %269 = sbr.rel (%p267) target = $region52
        $region51: #{tpu_custom_call.1} parent=39 // pred_region
          %270 = dma.done [#allocation7], 64
        $region52: #{tpu_custom_call.1} parent=39 // pred_fallthru
          _
        // Predicated region
        $region53: #{tpu_custom_call.1} parent=39 // pred_check
          %p271 = pneg %p143
        $region54: #{tpu_custom_call.1} parent=39 // pred_check_branch
          %273 = sbr.rel (%p271) target = $region56
        $region55: #{tpu_custom_call.1} parent=39 // pred_region
          %274 = dma.done [#allocation10], 16
        $region56: #{tpu_custom_call.1} parent=39 // pred_fallthru
          _
        %s275 = sand.u32 %s46, 1
        %s276 = scalar_lea.sflag [#allocation4], %s275
        %s277 = sand.u32 %s46, 1
        %s278 = smul.addr %s277, 512
        %s279 = scalar_lea.vmem [#allocation3], %s278
        %p280 = pneg %p59
        %p281 = pneg %p56
        %p282 = pneg %p80
        %p283 = pneg %p77
        %p284 = pneg %p101
        %p285 = pneg %p98
        %p286 = pneg %p122
        %p287 = pneg %p119
        %p288 = pneg %p143
        %p289 = pneg %p140
        %p290 = pneg %p169
        %p291 = pneg %p166
        %s292 = sand.u32 %s156, 1
        %s293 = scalar_lea.sflag [#allocation5], %s292
        %s294 = sand.u32 %s156, 1
        %s295 = smul.addr %s294, 8
        %s296 = scalar_lea.vmem [#allocation11], %s295
        %s297 = smul.u32 8, %s28
        %p298 = scmp.eq.s32.totalorder %s29, 0
        // Predicated region
        $region57: #{tpu_custom_call.1} parent=39 // pred_check
          %p299 = pneg %p298
        $region58: #{tpu_custom_call.1} parent=39 // pred_check_branch
          %301 = sbr.rel (%p299) target = $region60
        $region59: #{tpu_custom_call.1} parent=39 // pred_region
          %vm302 = vcmask 523264
          %303 = vst.msk [vmem:[#allocation2] sm:$0xff] %vm302, 0.0
        $region60: #{tpu_custom_call.1} parent=39 // pred_fallthru
          _
        %v304 = vld [vmem:[#allocation2] sm:$0xff]
        %v305 = vld [vmem:[%s258] sm:$0xff]
        %v306 = vld [vmem:[%s258 + $0x8] sm:$0xff]
        %v307 = vld [vmem:[%s258 + $0x10] sm:$0xff]
        %v308 = vld [vmem:[%s258 + $0x18] sm:$0xff]
        %v309 = vld [vmem:[%s258 + $0x20] sm:$0xff]
        %v310 = vld [vmem:[%s258 + $0x28] sm:$0xff]
        %v311 = vld [vmem:[%s258 + $0x30] sm:$0xff]
        %v312 = vld [vmem:[%s258 + $0x38] sm:$0xff]
        %v313 = vld [vmem:[%s258 + $0x40] sm:$0xff]
        %v314 = vld [vmem:[%s258 + $0x48] sm:$0xff]
        %v315 = vld [vmem:[%s258 + $0x50] sm:$0xff]
        %v316 = vld [vmem:[%s258 + $0x58] sm:$0xff]
        %v317 = vld [vmem:[%s258 + $0x60] sm:$0xff]
        %v318 = vld [vmem:[%s258 + $0x68] sm:$0xff]
        %v319 = vld [vmem:[%s258 + $0x70] sm:$0xff]
        %v320 = vld [vmem:[%s258 + $0x78] sm:$0xff]
        %v321 = vld [vmem:[%s258 + $0x80] sm:$0xff]
        %v322 = vld [vmem:[%s258 + $0x88] sm:$0xff]
        %v323 = vld [vmem:[%s258 + $0x90] sm:$0xff]
        %v324 = vld [vmem:[%s258 + $0x98] sm:$0xff]
        %v325 = vld [vmem:[%s258 + $0xa0] sm:$0xff]
        %v326 = vld [vmem:[%s258 + $0xa8] sm:$0xff]
        %v327 = vld [vmem:[%s258 + $0xb0] sm:$0xff]
        %v328 = vld [vmem:[%s258 + $0xb8] sm:$0xff]
        %v329 = vld [vmem:[%s258 + $0xc0] sm:$0xff]
        %v330 = vld [vmem:[%s258 + $0xc8] sm:$0xff]
        %v331 = vld [vmem:[%s258 + $0xd0] sm:$0xff]
        %v332 = vld [vmem:[%s258 + $0xd8] sm:$0xff]
        %v333 = vld [vmem:[%s258 + $0xe0] sm:$0xff]
        %v334 = vld [vmem:[%s258 + $0xe8] sm:$0xff]
        %v335 = vld [vmem:[%s258 + $0xf0] sm:$0xff]
        %v336 = vld [vmem:[%s258 + $0xf8] sm:$0xff]
        %v337 = vld [vmem:[%s258 + $0x100] sm:$0xff]
        %v338 = vld [vmem:[%s258 + $0x108] sm:$0xff]
        %v339 = vld [vmem:[%s258 + $0x110] sm:$0xff]
        %v340 = vld [vmem:[%s258 + $0x118] sm:$0xff]
        %v341 = vld [vmem:[%s258 + $0x120] sm:$0xff]
        %v342 = vld [vmem:[%s258 + $0x128] sm:$0xff]
        %v343 = vld [vmem:[%s258 + $0x130] sm:$0xff]
        %v344 = vld [vmem:[%s258 + $0x138] sm:$0xff]
        %v345 = vld [vmem:[%s258 + $0x140] sm:$0xff]
        %v346 = vld [vmem:[%s258 + $0x148] sm:$0xff]
        %v347 = vld [vmem:[%s258 + $0x150] sm:$0xff]
        %v348 = vld [vmem:[%s258 + $0x158] sm:$0xff]
        %v349 = vld [vmem:[%s258 + $0x160] sm:$0xff]
        %v350 = vld [vmem:[%s258 + $0x168] sm:$0xff]
        %v351 = vld [vmem:[%s258 + $0x170] sm:$0xff]
        %v352 = vld [vmem:[%s258 + $0x178] sm:$0xff]
        %v353 = vld [vmem:[%s258 + $0x180] sm:$0xff]
        %v354 = vld [vmem:[%s258 + $0x188] sm:$0xff]
        %v355 = vld [vmem:[%s258 + $0x190] sm:$0xff]
        %v356 = vld [vmem:[%s258 + $0x198] sm:$0xff]
        %v357 = vld [vmem:[%s258 + $0x1a0] sm:$0xff]
        %v358 = vld [vmem:[%s258 + $0x1a8] sm:$0xff]
        %v359 = vld [vmem:[%s258 + $0x1b0] sm:$0xff]
        %v360 = vld [vmem:[%s258 + $0x1b8] sm:$0xff]
        %v361 = vld [vmem:[%s258 + $0x1c0] sm:$0xff]
        %v362 = vld [vmem:[%s258 + $0x1c8] sm:$0xff]
        %v363 = vld [vmem:[%s258 + $0x1d0] sm:$0xff]
        %v364 = vld [vmem:[%s258 + $0x1d8] sm:$0xff]
        %v365 = vld [vmem:[%s258 + $0x1e0] sm:$0xff]
        %v366 = vld [vmem:[%s258 + $0x1e8] sm:$0xff]
        %v367 = vld [vmem:[%s258 + $0x1f0] sm:$0xff]
        %v368 = vld [vmem:[%s258 + $0x1f8] sm:$0xff]
        %369 = vadd.xlane.f32.xlu0 %v305
        %v370 = vpop.xlane.xlu0 %369
        %371 = vadd.xlane.f32.xlu0 %v306
        %v372 = vpop.xlane.xlu0 %371
        %373 = vadd.xlane.f32.xlu0 %v307
        %v374 = vpop.xlane.xlu0 %373
        %375 = vadd.xlane.f32.xlu0 %v308
        %v376 = vpop.xlane.xlu0 %375
        %377 = vadd.xlane.f32.xlu0 %v309
        %v378 = vpop.xlane.xlu0 %377
        %379 = vadd.xlane.f32.xlu0 %v310
        %v380 = vpop.xlane.xlu0 %379
        %381 = vadd.xlane.f32.xlu0 %v311
        %v382 = vpop.xlane.xlu0 %381
        %383 = vadd.xlane.f32.xlu0 %v312
        %v384 = vpop.xlane.xlu0 %383
        %385 = vadd.xlane.f32.xlu0 %v313
        %v386 = vpop.xlane.xlu0 %385
        %387 = vadd.xlane.f32.xlu0 %v314
        %v388 = vpop.xlane.xlu0 %387
        %389 = vadd.xlane.f32.xlu0 %v315
        %v390 = vpop.xlane.xlu0 %389
        %391 = vadd.xlane.f32.xlu0 %v316
        %v392 = vpop.xlane.xlu0 %391
        %393 = vadd.xlane.f32.xlu0 %v317
        %v394 = vpop.xlane.xlu0 %393
        %395 = vadd.xlane.f32.xlu0 %v318
        %v396 = vpop.xlane.xlu0 %395
        %397 = vadd.xlane.f32.xlu0 %v319
        %v398 = vpop.xlane.xlu0 %397
        %399 = vadd.xlane.f32.xlu0 %v320
        %v400 = vpop.xlane.xlu0 %399
        %401 = vadd.xlane.f32.xlu0 %v321
        %v402 = vpop.xlane.xlu0 %401
        %403 = vadd.xlane.f32.xlu0 %v322
        %v404 = vpop.xlane.xlu0 %403
        %405 = vadd.xlane.f32.xlu0 %v323
        %v406 = vpop.xlane.xlu0 %405
        %407 = vadd.xlane.f32.xlu0 %v324
        %v408 = vpop.xlane.xlu0 %407
        %409 = vadd.xlane.f32.xlu0 %v325
        %v410 = vpop.xlane.xlu0 %409
        %411 = vadd.xlane.f32.xlu0 %v326
        %v412 = vpop.xlane.xlu0 %411
        %413 = vadd.xlane.f32.xlu0 %v327
        %v414 = vpop.xlane.xlu0 %413
        %415 = vadd.xlane.f32.xlu0 %v328
        %v416 = vpop.xlane.xlu0 %415
        %417 = vadd.xlane.f32.xlu0 %v329
        %v418 = vpop.xlane.xlu0 %417
        %419 = vadd.xlane.f32.xlu0 %v330
        %v420 = vpop.xlane.xlu0 %419
        %421 = vadd.xlane.f32.xlu0 %v331
        %v422 = vpop.xlane.xlu0 %421
        %423 = vadd.xlane.f32.xlu0 %v332
        %v424 = vpop.xlane.xlu0 %423
        %425 = vadd.xlane.f32.xlu0 %v333
        %v426 = vpop.xlane.xlu0 %425
        %427 = vadd.xlane.f32.xlu0 %v334
        %v428 = vpop.xlane.xlu0 %427
        %429 = vadd.xlane.f32.xlu0 %v335
        %v430 = vpop.xlane.xlu0 %429
        %431 = vadd.xlane.f32.xlu0 %v336
        %v432 = vpop.xlane.xlu0 %431
        %433 = vadd.xlane.f32.xlu0 %v337
        %v434 = vpop.xlane.xlu0 %433
        %435 = vadd.xlane.f32.xlu0 %v338
        %v436 = vpop.xlane.xlu0 %435
        %437 = vadd.xlane.f32.xlu0 %v339
        %v438 = vpop.xlane.xlu0 %437
        %439 = vadd.xlane.f32.xlu0 %v340
        %v440 = vpop.xlane.xlu0 %439
        %441 = vadd.xlane.f32.xlu0 %v341
        %v442 = vpop.xlane.xlu0 %441
        %443 = vadd.xlane.f32.xlu0 %v342
        %v444 = vpop.xlane.xlu0 %443
        %445 = vadd.xlane.f32.xlu0 %v343
        %v446 = vpop.xlane.xlu0 %445
        %447 = vadd.xlane.f32.xlu0 %v344
        %v448 = vpop.xlane.xlu0 %447
        %449 = vadd.xlane.f32.xlu0 %v345
        %v450 = vpop.xlane.xlu0 %449
        %451 = vadd.xlane.f32.xlu0 %v346
        %v452 = vpop.xlane.xlu0 %451
        %453 = vadd.xlane.f32.xlu0 %v347
        %v454 = vpop.xlane.xlu0 %453
        %455 = vadd.xlane.f32.xlu0 %v348
        %v456 = vpop.xlane.xlu0 %455
        %457 = vadd.xlane.f32.xlu0 %v349
        %v458 = vpop.xlane.xlu0 %457
        %459 = vadd.xlane.f32.xlu0 %v350
        %v460 = vpop.xlane.xlu0 %459
        %461 = vadd.xlane.f32.xlu0 %v351
        %v462 = vpop.xlane.xlu0 %461
        %463 = vadd.xlane.f32.xlu0 %v352
        %v464 = vpop.xlane.xlu0 %463
        %465 = vadd.xlane.f32.xlu0 %v353
        %v466 = vpop.xlane.xlu0 %465
        %467 = vadd.xlane.f32.xlu0 %v354
        %v468 = vpop.xlane.xlu0 %467
        %469 = vadd.xlane.f32.xlu0 %v355
        %v470 = vpop.xlane.xlu0 %469
        %471 = vadd.xlane.f32.xlu0 %v356
        %v472 = vpop.xlane.xlu0 %471
        %473 = vadd.xlane.f32.xlu0 %v357
        %v474 = vpop.xlane.xlu0 %473
        %475 = vadd.xlane.f32.xlu0 %v358
        %v476 = vpop.xlane.xlu0 %475
        %477 = vadd.xlane.f32.xlu0 %v359
        %v478 = vpop.xlane.xlu0 %477
        %479 = vadd.xlane.f32.xlu0 %v360
        %v480 = vpop.xlane.xlu0 %479
        %481 = vadd.xlane.f32.xlu0 %v361
        %v482 = vpop.xlane.xlu0 %481
        %483 = vadd.xlane.f32.xlu0 %v362
        %v484 = vpop.xlane.xlu0 %483
        %485 = vadd.xlane.f32.xlu0 %v363
        %v486 = vpop.xlane.xlu0 %485
        %487 = vadd.xlane.f32.xlu0 %v364
        %v488 = vpop.xlane.xlu0 %487
        %489 = vadd.xlane.f32.xlu0 %v365
        %v490 = vpop.xlane.xlu0 %489
        %491 = vadd.xlane.f32.xlu0 %v366
        %v492 = vpop.xlane.xlu0 %491
        %493 = vadd.xlane.f32.xlu0 %v367
        %v494 = vpop.xlane.xlu0 %493
        %495 = vadd.xlane.f32.xlu0 %v368
        %v496 = vpop.xlane.xlu0 %495
        %v561 = vlaneseq
        %v562 = vand.u32 %v561, 127
        %v563 = vlaneseq
        %v564 = vshrl.u32 %v563, 7
        %v565 = vsub.s32 %v562, %v564
        %v566 = vrot.slane %v370, %v565
        %v567 = vadd.s32 %v562, 4294967288
        %v568 = vlaneseq
        %v569 = vshrl.u32 %v568, 7
        %v570 = vsub.s32 %v567, %v569
        %v571 = vrot.slane %v372, %v570
        %vm572 = vcmask 130112
        %v573 = vsel %vm572, %v571, %v566
        %v574 = vadd.s32 %v562, 4294967280
        %v575 = vlaneseq
        %v576 = vshrl.u32 %v575, 7
        %v577 = vsub.s32 %v574, %v576
        %v578 = vrot.slane %v374, %v577
        %vm579 = vcmask 195712
        %v580 = vsel %vm579, %v578, %v573
        %v581 = vadd.s32 %v562, 4294967272
        %v582 = vlaneseq
        %v583 = vshrl.u32 %v582, 7
        %v584 = vsub.s32 %v581, %v583
        %v585 = vrot.slane %v376, %v584
        %vm586 = vcmask 261312
        %v587 = vsel %vm586, %v585, %v580
        %v588 = vadd.s32 %v562, 4294967264
        %v589 = vlaneseq
        %v590 = vshrl.u32 %v589, 7
        %v591 = vsub.s32 %v588, %v590
        %v592 = vrot.slane %v378, %v591
        %vm593 = vcmask 326912
        %v594 = vsel %vm593, %v592, %v587
        %v595 = vadd.s32 %v562, 4294967256
        %v596 = vlaneseq
        %v597 = vshrl.u32 %v596, 7
        %v598 = vsub.s32 %v595, %v597
        %v599 = vrot.slane %v380, %v598
        %vm600 = vcmask 392512
        %v601 = vsel %vm600, %v599, %v594
        %v602 = vadd.s32 %v562, 4294967248
        %v603 = vlaneseq
        %v604 = vshrl.u32 %v603, 7
        %v605 = vsub.s32 %v602, %v604
        %v606 = vrot.slane %v382, %v605
        %vm607 = vcmask 458112
        %v608 = vsel %vm607, %v606, %v601
        %v609 = vadd.s32 %v562, 4294967240
        %v610 = vlaneseq
        %v611 = vshrl.u32 %v610, 7
        %v612 = vsub.s32 %v609, %v611
        %v613 = vrot.slane %v384, %v612
        %vm614 = vcmask 523712
        %v615 = vsel %vm614, %v613, %v608
        %v616 = vlaneseq
        %v617 = vshrl.u32 %v616, 7
        %v618 = vsub.s32 %v562, %v617
        %v619 = vrot.slane %v386, %v618
        %v620 = vlaneseq
        %v621 = vshrl.u32 %v620, 7
        %v622 = vsub.s32 %v567, %v621
        %v623 = vrot.slane %v388, %v622
        %v624 = vsel %vm572, %v623, %v619
        %v625 = vlaneseq
        %v626 = vshrl.u32 %v625, 7
        %v627 = vsub.s32 %v574, %v626
        %v628 = vrot.slane %v390, %v627
        %v629 = vsel %vm579, %v628, %v624
        %v630 = vlaneseq
        %v631 = vshrl.u32 %v630, 7
        %v632 = vsub.s32 %v581, %v631
        %v633 = vrot.slane %v392, %v632
        %v634 = vsel %vm586, %v633, %v629
        %v635 = vlaneseq
        %v636 = vshrl.u32 %v635, 7
        %v637 = vsub.s32 %v588, %v636
        %v638 = vrot.slane %v394, %v637
        %v639 = vsel %vm593, %v638, %v634
        %v640 = vlaneseq
        %v641 = vshrl.u32 %v640, 7
        %v642 = vsub.s32 %v595, %v641
        %v643 = vrot.slane %v396, %v642
        %v644 = vsel %vm600, %v643, %v639
        %v645 = vlaneseq
        %v646 = vshrl.u32 %v645, 7
        %v647 = vsub.s32 %v602, %v646
        %v648 = vrot.slane %v398, %v647
        %v649 = vsel %vm607, %v648, %v644
        %v650 = vlaneseq
        %v651 = vshrl.u32 %v650, 7
        %v652 = vsub.s32 %v609, %v651
        %v653 = vrot.slane %v400, %v652
        %v654 = vsel %vm614, %v653, %v649
        %v655 = vlaneseq
        %v656 = vshrl.u32 %v655, 7
        %v657 = vsub.s32 %v562, %v656
        %v658 = vrot.slane %v402, %v657
        %v659 = vlaneseq
        %v660 = vshrl.u32 %v659, 7
        %v661 = vsub.s32 %v567, %v660
        %v662 = vrot.slane %v404, %v661
        %v663 = vsel %vm572, %v662, %v658
        %v664 = vlaneseq
        %v665 = vshrl.u32 %v664, 7
        %v666 = vsub.s32 %v574, %v665
        %v667 = vrot.slane %v406, %v666
        %v668 = vsel %vm579, %v667, %v663
        %v669 = vlaneseq
        %v670 = vshrl.u32 %v669, 7
        %v671 = vsub.s32 %v581, %v670
        %v672 = vrot.slane %v408, %v671
        %v673 = vsel %vm586, %v672, %v668
        %v674 = vlaneseq
        %v675 = vshrl.u32 %v674, 7
        %v676 = vsub.s32 %v588, %v675
        %v677 = vrot.slane %v410, %v676
        %v678 = vsel %vm593, %v677, %v673
        %v679 = vlaneseq
        %v680 = vshrl.u32 %v679, 7
        %v681 = vsub.s32 %v595, %v680
        %v682 = vrot.slane %v412, %v681
        %v683 = vsel %vm600, %v682, %v678
        %v684 = vlaneseq
        %v685 = vshrl.u32 %v684, 7
        %v686 = vsub.s32 %v602, %v685
        %v687 = vrot.slane %v414, %v686
        %v688 = vsel %vm607, %v687, %v683
        %v689 = vlaneseq
        %v690 = vshrl.u32 %v689, 7
        %v691 = vsub.s32 %v609, %v690
        %v692 = vrot.slane %v416, %v691
        %v693 = vsel %vm614, %v692, %v688
        %v694 = vlaneseq
        %v695 = vshrl.u32 %v694, 7
        %v696 = vsub.s32 %v562, %v695
        %v697 = vrot.slane %v418, %v696
        %v698 = vlaneseq
        %v699 = vshrl.u32 %v698, 7
        %v700 = vsub.s32 %v567, %v699
        %v701 = vrot.slane %v420, %v700
        %v702 = vsel %vm572, %v701, %v697
        %v703 = vlaneseq
        %v704 = vshrl.u32 %v703, 7
        %v705 = vsub.s32 %v574, %v704
        %v706 = vrot.slane %v422, %v705
        %v707 = vsel %vm579, %v706, %v702
        %v708 = vlaneseq
        %v709 = vshrl.u32 %v708, 7
        %v710 = vsub.s32 %v581, %v709
        %v711 = vrot.slane %v424, %v710
        %v712 = vsel %vm586, %v711, %v707
        %v713 = vlaneseq
        %v714 = vshrl.u32 %v713, 7
        %v715 = vsub.s32 %v588, %v714
        %v716 = vrot.slane %v426, %v715
        %v717 = vsel %vm593, %v716, %v712
        %v718 = vlaneseq
        %v719 = vshrl.u32 %v718, 7
        %v720 = vsub.s32 %v595, %v719
        %v721 = vrot.slane %v428, %v720
        %v722 = vsel %vm600, %v721, %v717
        %v723 = vlaneseq
        %v724 = vshrl.u32 %v723, 7
        %v725 = vsub.s32 %v602, %v724
        %v726 = vrot.slane %v430, %v725
        %v727 = vsel %vm607, %v726, %v722
        %v728 = vlaneseq
        %v729 = vshrl.u32 %v728, 7
        %v730 = vsub.s32 %v609, %v729
        %v731 = vrot.slane %v432, %v730
        %v732 = vsel %vm614, %v731, %v727
        %v733 = vlaneseq
        %v734 = vshrl.u32 %v733, 7
        %v735 = vsub.s32 %v562, %v734
        %v736 = vrot.slane %v434, %v735
        %v737 = vlaneseq
        %v738 = vshrl.u32 %v737, 7
        %v739 = vsub.s32 %v567, %v738
        %v740 = vrot.slane %v436, %v739
        %v741 = vsel %vm572, %v740, %v736
        %v742 = vlaneseq
        %v743 = vshrl.u32 %v742, 7
        %v744 = vsub.s32 %v574, %v743
        %v745 = vrot.slane %v438, %v744
        %v746 = vsel %vm579, %v745, %v741
        %v747 = vlaneseq
        %v748 = vshrl.u32 %v747, 7
        %v749 = vsub.s32 %v581, %v748
        %v750 = vrot.slane %v440, %v749
        %v751 = vsel %vm586, %v750, %v746
        %v752 = vlaneseq
        %v753 = vshrl.u32 %v752, 7
        %v754 = vsub.s32 %v588, %v753
        %v755 = vrot.slane %v442, %v754
        %v756 = vsel %vm593, %v755, %v751
        %v757 = vlaneseq
        %v758 = vshrl.u32 %v757, 7
        %v759 = vsub.s32 %v595, %v758
        %v760 = vrot.slane %v444, %v759
        %v761 = vsel %vm600, %v760, %v756
        %v762 = vlaneseq
        %v763 = vshrl.u32 %v762, 7
        %v764 = vsub.s32 %v602, %v763
        %v765 = vrot.slane %v446, %v764
        %v766 = vsel %vm607, %v765, %v761
        %v767 = vlaneseq
        %v768 = vshrl.u32 %v767, 7
        %v769 = vsub.s32 %v609, %v768
        %v770 = vrot.slane %v448, %v769
        %v771 = vsel %vm614, %v770, %v766
        %v772 = vlaneseq
        %v773 = vshrl.u32 %v772, 7
        %v774 = vsub.s32 %v562, %v773
        %v775 = vrot.slane %v450, %v774
        %v776 = vlaneseq
        %v777 = vshrl.u32 %v776, 7
        %v778 = vsub.s32 %v567, %v777
        %v779 = vrot.slane %v452, %v778
        %v780 = vsel %vm572, %v779, %v775
        %v781 = vlaneseq
        %v782 = vshrl.u32 %v781, 7
        %v783 = vsub.s32 %v574, %v782
        %v784 = vrot.slane %v454, %v783
        %v785 = vsel %vm579, %v784, %v780
        %v786 = vlaneseq
        %v787 = vshrl.u32 %v786, 7
        %v788 = vsub.s32 %v581, %v787
        %v789 = vrot.slane %v456, %v788
        %v790 = vsel %vm586, %v789, %v785
        %v791 = vlaneseq
        %v792 = vshrl.u32 %v791, 7
        %v793 = vsub.s32 %v588, %v792
        %v794 = vrot.slane %v458, %v793
        %v795 = vsel %vm593, %v794, %v790
        %v796 = vlaneseq
        %v797 = vshrl.u32 %v796, 7
        %v798 = vsub.s32 %v595, %v797
        %v799 = vrot.slane %v460, %v798
        %v800 = vsel %vm600, %v799, %v795
        %v801 = vlaneseq
        %v802 = vshrl.u32 %v801, 7
        %v803 = vsub.s32 %v602, %v802
        %v804 = vrot.slane %v462, %v803
        %v805 = vsel %vm607, %v804, %v800
        %v806 = vlaneseq
        %v807 = vshrl.u32 %v806, 7
        %v808 = vsub.s32 %v609, %v807
        %v809 = vrot.slane %v464, %v808
        %v810 = vsel %vm614, %v809, %v805
        %v811 = vlaneseq
        %v812 = vshrl.u32 %v811, 7
        %v813 = vsub.s32 %v562, %v812
        %v814 = vrot.slane %v466, %v813
        %v815 = vlaneseq
        %v816 = vshrl.u32 %v815, 7
        %v817 = vsub.s32 %v567, %v816
        %v818 = vrot.slane %v468, %v817
        %v819 = vsel %vm572, %v818, %v814
        %v820 = vlaneseq
        %v821 = vshrl.u32 %v820, 7
        %v822 = vsub.s32 %v574, %v821
        %v823 = vrot.slane %v470, %v822
        %v824 = vsel %vm579, %v823, %v819
        %v825 = vlaneseq
        %v826 = vshrl.u32 %v825, 7
        %v827 = vsub.s32 %v581, %v826
        %v828 = vrot.slane %v472, %v827
        %v829 = vsel %vm586, %v828, %v824
        %v830 = vlaneseq
        %v831 = vshrl.u32 %v830, 7
        %v832 = vsub.s32 %v588, %v831
        %v833 = vrot.slane %v474, %v832
        %v834 = vsel %vm593, %v833, %v829
        %v835 = vlaneseq
        %v836 = vshrl.u32 %v835, 7
        %v837 = vsub.s32 %v595, %v836
        %v838 = vrot.slane %v476, %v837
        %v839 = vsel %vm600, %v838, %v834
        %v840 = vlaneseq
        %v841 = vshrl.u32 %v840, 7
        %v842 = vsub.s32 %v602, %v841
        %v843 = vrot.slane %v478, %v842
        %v844 = vsel %vm607, %v843, %v839
        %v845 = vlaneseq
        %v846 = vshrl.u32 %v845, 7
        %v847 = vsub.s32 %v609, %v846
        %v848 = vrot.slane %v480, %v847
        %v849 = vsel %vm614, %v848, %v844
        %v850 = vlaneseq
        %v851 = vshrl.u32 %v850, 7
        %v852 = vsub.s32 %v562, %v851
        %v853 = vrot.slane %v482, %v852
        %v854 = vlaneseq
        %v855 = vshrl.u32 %v854, 7
        %v856 = vsub.s32 %v567, %v855
        %v857 = vrot.slane %v484, %v856
        %v858 = vsel %vm572, %v857, %v853
        %v859 = vlaneseq
        %v860 = vshrl.u32 %v859, 7
        %v861 = vsub.s32 %v574, %v860
        %v862 = vrot.slane %v486, %v861
        %v863 = vsel %vm579, %v862, %v858
        %v864 = vlaneseq
        %v865 = vshrl.u32 %v864, 7
        %v866 = vsub.s32 %v581, %v865
        %v867 = vrot.slane %v488, %v866
        %v868 = vsel %vm586, %v867, %v863
        %v869 = vlaneseq
        %v870 = vshrl.u32 %v869, 7
        %v871 = vsub.s32 %v588, %v870
        %v872 = vrot.slane %v490, %v871
        %v873 = vsel %vm593, %v872, %v868
        %v874 = vlaneseq
        %v875 = vshrl.u32 %v874, 7
        %v876 = vsub.s32 %v595, %v875
        %v877 = vrot.slane %v492, %v876
        %v878 = vsel %vm600, %v877, %v873
        %v879 = vlaneseq
        %v880 = vshrl.u32 %v879, 7
        %v881 = vsub.s32 %v602, %v880
        %v882 = vrot.slane %v494, %v881
        %v883 = vsel %vm607, %v882, %v878
        %v884 = vlaneseq
        %v885 = vshrl.u32 %v884, 7
        %v886 = vsub.s32 %v609, %v885
        %v887 = vrot.slane %v496, %v886
        %v888 = vsel %vm614, %v887, %v883
        %vm889 = vcmask 1041409
        %v890 = vsel %vm889, %v654, %v615
        %vm891 = vcmask 1042434
        %v892 = vsel %vm891, %v693, %v890
        %vm893 = vcmask 1043459
        %v894 = vsel %vm893, %v732, %v892
        %vm895 = vcmask 1044484
        %v896 = vsel %vm895, %v771, %v894
        %vm897 = vcmask 1045509
        %v898 = vsel %vm897, %v810, %v896
        %vm899 = vcmask 1046534
        %v900 = vsel %vm899, %v849, %v898
        %vm901 = vcmask 1047559
        %v902 = vsel %vm901, %v888, %v900
        %v904 = vadd.f32 %v304, %v902
        %vm905 = vcmask 523264
        %906 = vst.msk [vmem:[#allocation2] sm:$0xff] %vm905, %v904
        %p907 = scmp.eq.s32.totalorder %s29, 3
        // Predicated region
        $region61: #{tpu_custom_call.1} parent=39 // pred_check
          %p908 = pneg %p907
        $region62: #{tpu_custom_call.1} parent=39 // pred_check_branch
          %910 = sbr.rel (%p908) target = $region64
        $region63: #{tpu_custom_call.1} parent=39 // pred_region
          %v911 = vld [vmem:[#allocation2] sm:$0xff]
          %v912 = vmul.f32 %v911, 0.001953125
          %v913 = vld [vmem:[%s1] sm:$0xff]
          %v914 = vld [vmem:[%s1 + $0x8] sm:$0xff]
          %v915 = vld [vmem:[%s1 + $0x10] sm:$0xff]
          %v916 = vld [vmem:[%s1 + $0x18] sm:$0xff]
          %v917 = vld [vmem:[%s1 + $0x20] sm:$0xff]
          %v918 = vld [vmem:[%s1 + $0x28] sm:$0xff]
          %v919 = vld [vmem:[%s1 + $0x30] sm:$0xff]
          %v920 = vld [vmem:[%s1 + $0x38] sm:$0xff]
          %v921 = vld [vmem:[#allocation6] sm:$0x1]
          %v923 = vlaneseq
          %v924 = vshrl.u32 %v923, 7
          %v925 = vsub.s32 0, %v924
          %v926 = vrot.slane %v921, %v925
          %v929 = vsel %vm905, %v912, 0
          %931 = vmatprep.subr.mxu0 0.0
          %932 = vmatpush1.msra.mxu0 0.0
          %933 = vmatprep.subr.mxu0 0.0
          %934 = vmatpush1.msra.mxu0 0.0
          %935 = vmatprep.subr.mxu0 0.0
          %936 = vmatpush1.msra.mxu0 0.0
          %937 = vmatprep.subr.mxu0 0.0
          %938 = vmatpush1.msra.mxu0 0.0
          %939 = vmatprep.subr.mxu0 0.0
          %940 = vmatpush1.msra.mxu0 0.0
          %941 = vmatprep.subr.mxu0 0.0
          %942 = vmatpush1.msra.mxu0 0.0
          %943 = vmatprep.subr.mxu0 0.0
          %944 = vmatpush1.msra.mxu0 0.0
          %945 = vmatprep.subr.mxu0 0.0
          %946 = vmatpush1.msra.mxu0 0.0
          %947 = vmatprep.subr.mxu0 0.0
          %948 = vmatpush1.msra.mxu0 %v920
          %949 = vmatprep.subr.mxu0 0.0
          %950 = vmatpush1.msra.mxu0 %v919
          %951 = vmatprep.subr.mxu0 0.0
          %952 = vmatpush1.msra.mxu0 %v918
          %953 = vmatprep.subr.mxu0 0.0
          %954 = vmatpush1.msra.mxu0 %v917
          %955 = vmatprep.subr.mxu0 0.0
          %956 = vmatpush1.msra.mxu0 %v916
          %957 = vmatprep.subr.mxu0 0.0
          %958 = vmatpush1.msra.mxu0 %v915
          %959 = vmatprep.subr.mxu0 0.0
          %960 = vmatpush1.msra.mxu0 %v914
          %961 = vmatprep.subr.mxu0 0.0
          %962 = vmatpush1.msra.mxu0 %v913
          %963 = vmatprep.subr.mxu0 0.0
          %964 = vmatpush2.msra.mxu0 0.0
          %965 = vmatprep.subr.mxu0 0.0
          %966 = vmatpush2.msra.mxu0 0.0
          %967 = vmatprep.subr.mxu0 0.0
          %968 = vmatpush2.msra.mxu0 0.0
          %969 = vmatprep.subr.mxu0 0.0
          %970 = vmatpush2.msra.mxu0 0.0
          %971 = vmatprep.subr.mxu0 0.0
          %972 = vmatpush2.msra.mxu0 0.0
          %973 = vmatprep.subr.mxu0 0.0
          %974 = vmatpush2.msra.mxu0 0.0
          %975 = vmatprep.subr.mxu0 0.0
          %976 = vmatpush2.msra.mxu0 0.0
          %977 = vmatprep.subr.mxu0 0.0
          %978 = vmatpush2.msra.mxu0 0.0
          %979 = vmatprep.subr.mxu0 0.0
          %980 = vmatpush2.msra.mxu0 0.0
          %981 = vmatprep.subr.mxu0 0.0
          %982 = vmatpush2.msra.mxu0 0.0
          %983 = vmatprep.subr.mxu0 0.0
          %984 = vmatpush2.msra.mxu0 0.0
          %985 = vmatprep.subr.mxu0 0.0
          %986 = vmatpush2.msra.mxu0 0.0
          %987 = vmatprep.subr.mxu0 0.0
          %988 = vmatpush2.msra.mxu0 0.0
          %989 = vmatprep.subr.mxu0 0.0
          %990 = vmatpush2.msra.mxu0 0.0
          %991 = vmatprep.subr.mxu0 0.0
          %992 = vmatpush2.msra.mxu0 0.0
          %993 = vmatprep.subr.mxu0 0.0
          %994 = vmatpush2.msra.mxu0 0.0
          %995 = vmatprep.mubr.f32.mxu0 0.0
          %996 = vmatmul.mubr.f32.gmra.mxu0 %v929
          %v997 = vpop.f32.mrf.mxu0
          %v998 = vadd.f32 %v926, %v997
          %v999 = vpop.f32.mrf.mxu0
          %1000 = vdwg.mxu0
          %v1001 = vmax.f32 %v998, 0.0
          %v1002 = vld [vmem:[#allocation8] sm:$0xf]
          %v1003 = vld [vmem:[#allocation9] sm:$0x1]
          %v1005 = vlaneseq
          %v1006 = vshrl.u32 %v1005, 7
          %v1007 = vsub.s32 0, %v1006
          %v1008 = vrot.slane %v1003, %v1007
          %vm1010 = vcmask 31744
          %v1012 = vsel %vm1010, %v1001, 0
          %vm1014 = vcmask 1043456
          %v1016 = vsel %vm1014, %v1002, 0
          %1018 = vmatprep.subr.mxu0 0.0
          %1019 = vmatpush1.msra.mxu0 0.0
          %1020 = vmatprep.subr.mxu0 0.0
          %1021 = vmatpush1.msra.mxu0 0.0
          %1022 = vmatprep.subr.mxu0 0.0
          %1023 = vmatpush1.msra.mxu0 0.0
          %1024 = vmatprep.subr.mxu0 0.0
          %1025 = vmatpush1.msra.mxu0 0.0
          %1026 = vmatprep.subr.mxu0 0.0
          %1027 = vmatpush1.msra.mxu0 0.0
          %1028 = vmatprep.subr.mxu0 0.0
          %1029 = vmatpush1.msra.mxu0 0.0
          %1030 = vmatprep.subr.mxu0 0.0
          %1031 = vmatpush1.msra.mxu0 0.0
          %1032 = vmatprep.subr.mxu0 0.0
          %1033 = vmatpush1.msra.mxu0 0.0
          %1034 = vmatprep.subr.mxu0 0.0
          %1035 = vmatpush1.msra.mxu0 0.0
          %1036 = vmatprep.subr.mxu0 0.0
          %1037 = vmatpush1.msra.mxu0 0.0
          %1038 = vmatprep.subr.mxu0 0.0
          %1039 = vmatpush1.msra.mxu0 0.0
          %1040 = vmatprep.subr.mxu0 0.0
          %1041 = vmatpush1.msra.mxu0 0.0
          %1042 = vmatprep.subr.mxu0 0.0
          %1043 = vmatpush1.msra.mxu0 0.0
          %1044 = vmatprep.subr.mxu0 0.0
          %1045 = vmatpush1.msra.mxu0 0.0
          %1046 = vmatprep.subr.mxu0 0.0
          %1047 = vmatpush1.msra.mxu0 0.0
          %1048 = vmatprep.subr.mxu0 0.0
          %1049 = vmatpush1.msra.mxu0 %v1016
          %1050 = vmatprep.subr.mxu0 0.0
          %1051 = vmatpush2.msra.mxu0 0.0
          %1052 = vmatprep.subr.mxu0 0.0
          %1053 = vmatpush2.msra.mxu0 0.0
          %1054 = vmatprep.subr.mxu0 0.0
          %1055 = vmatpush2.msra.mxu0 0.0
          %1056 = vmatprep.subr.mxu0 0.0
          %1057 = vmatpush2.msra.mxu0 0.0
          %1058 = vmatprep.subr.mxu0 0.0
          %1059 = vmatpush2.msra.mxu0 0.0
          %1060 = vmatprep.subr.mxu0 0.0
          %1061 = vmatpush2.msra.mxu0 0.0
          %1062 = vmatprep.subr.mxu0 0.0
          %1063 = vmatpush2.msra.mxu0 0.0
          %1064 = vmatprep.subr.mxu0 0.0
          %1065 = vmatpush2.msra.mxu0 0.0
          %1066 = vmatprep.subr.mxu0 0.0
          %1067 = vmatpush2.msra.mxu0 0.0
          %1068 = vmatprep.subr.mxu0 0.0
          %1069 = vmatpush2.msra.mxu0 0.0
          %1070 = vmatprep.subr.mxu0 0.0
          %1071 = vmatpush2.msra.mxu0 0.0
          %1072 = vmatprep.subr.mxu0 0.0
          %1073 = vmatpush2.msra.mxu0 0.0
          %1074 = vmatprep.subr.mxu0 0.0
          %1075 = vmatpush2.msra.mxu0 0.0
          %1076 = vmatprep.subr.mxu0 0.0
          %1077 = vmatpush2.msra.mxu0 0.0
          %1078 = vmatprep.subr.mxu0 0.0
          %1079 = vmatpush2.msra.mxu0 0.0
          %1080 = vmatprep.subr.mxu0 0.0
          %1081 = vmatpush2.msra.mxu0 0.0
          %1082 = vmatprep.mubr.f32.mxu0 0.0
          %1083 = vmatmul.mubr.f32.gmra.mxu0 %v1012
          %v1084 = vpop.f32.mrf.mxu0
          %v1085 = vadd.f32 %v1008, %v1084
          %v1086 = vpop.f32.mrf.mxu0
          %1087 = vdwg.mxu0
          %v1088 = vxor.u32 %v1085, 2147483648
          %v1089 = vmul.f32 %v1088, 1.442695
          %v1090 = vpow.pop %v1089
          %v1091 = vadd.f32 %v1090, 1.0
          %v1092 = vrcp.pop %v1091
          %v1093 = vmul.f32 1.0, %v1092
          %1094 = vst.msk [vmem:[%s296] sm:$0xff] %vm905, %v1093
        $region64: #{tpu_custom_call.1} parent=39 // pred_fallthru
          _
        %s1095 = sand.u32 %s156, 1
        %s1096 = scalar_lea.sflag [#allocation5], %s1095
        %s1097 = sand.u32 %s156, 1
        %s1098 = smul.addr %s1097, 8
        %s1099 = scalar_lea.vmem [#allocation11], %s1098
        // Predicated region
        $region65: #{tpu_custom_call.1} parent=39 // pred_check
          %p1100 = pneg %p166
        $region66: #{tpu_custom_call.1} parent=39 // pred_check_branch
          %1102 = sbr.rel (%p1100) target = $region68
        $region67: #{tpu_custom_call.1} parent=39 // pred_region
          %s1104 = ssub.s32 128, 128
          %1105 = vsyncadd %s1096, %s1104
          %s1106 = smul.addr %s28, 128
          %s1107 = scalar_lea.hbm %s5, %s1106
          %s1109 = sshll.u32 %s1099, 4
          %s1110 = int_to_ptr.vmem [resolvable:$true] %s1109
          %1112 = dma.vmem_to_hbm [thread:$0]  %s1110, 128, %s1107, %s1096
        $region68: #{tpu_custom_call.1} parent=39 // pred_fallthru
          _
      $region40: #{tpu_custom_call.1} parent=5 // pred_fallthru
        _
      %p1113 = scmp.le.s32.totalorder 2, %s19
      // Predicated region
      $region69: #{tpu_custom_call.1} parent=5 // pred_check
        %p1114 = pneg %p1113
      $region70: #{tpu_custom_call.1} parent=5 // pred_check_branch
        %1116 = sbr.rel (%p1114) target = $region72
      $region71: #{tpu_custom_call.1} parent=5 // pred_region
        %s1117 = ssub.s32 %s19, 2
        // Predicated region
        $region73: #{tpu_custom_call.1} parent=71 // pred_check
          %p1118 = pneg %p172
        $region74: #{tpu_custom_call.1} parent=71 // pred_check_branch
          %1120 = sbr.rel (%p1118) target = $region76
        $region75: #{tpu_custom_call.1} parent=71 // pred_region
          %s1121 = sand.u32 %s157, 1
          %s1122 = scalar_lea.sflag [#allocation5], %s1121
          %s1123 = sand.u32 %s157, 1
          %s1124 = smul.addr %s1123, 8
          %s1125 = scalar_lea.vmem [#allocation11], %s1124
          %1126 = dma.done %s1122, 128
        $region76: #{tpu_custom_call.1} parent=71 // pred_fallthru
          _
      $region72: #{tpu_custom_call.1} parent=5 // pred_fallthru
        _
    $region6: #{tpu_custom_call.1} parent=1 // loop_footer
      %s23 = sadd.s32 1, %s19
    $region7: #{tpu_custom_call.1} parent=1 // loop_footer_branch
      %18 = sbr.rel target = $region3
    $region8: #{tpu_custom_call.1} parent=1 // loop_exit
      _
    %1127 = vsyncpa [#allocation4], 1
    %s1128 = scalar_lea.sflag [#allocation4], 1
    %1129 = vsyncpa %s1128, 1
    %1130 = vsyncpa [#allocation7], 1
    %1131 = vsyncpa [#allocation10], 1
    %1132 = vsyncpa [#allocation5], 1
    %s1133 = scalar_lea.sflag [#allocation5], 1
    %1134 = vsyncpa %s1133, 1

</llo_original>
